<compile_context>
chip_gen: v7x
topology: tpu7x:2x2x1
jax: 0.10.0
libtpu: 0.0.40
codegen_flags: <defaults>
</compile_context>

<pallas_src>
import functools

import jax
import jax.numpy as jnp
from jax.experimental import pallas as pl
from jax.experimental.pallas import tpu as pltpu


# ----------------------------------------------------------------------------
# Kernel
# ----------------------------------------------------------------------------
def _se_kernel(x_ref, w1_ref, b1_ref, w2_ref, b2_ref, o_ref, *, channels_last):
    # Squeeze: global average pool, accumulated in f32.  Read the ref directly
    # (do NOT bind the full tile and keep it live across the matvec section).
    if channels_last:
        # x_ref: (TN, HW, C) -- C on lanes, pool over the sublane (HW) axis.
        s = jnp.sum(x_ref[...], axis=1, dtype=jnp.float32)              # (TN, C)
    else:
        # x_ref: (TN, C, HW) -- HW on lanes, pool over the lane axis.
        s = jnp.sum(x_ref[...], axis=2, dtype=jnp.float32)              # (TN, C)

    # conv_reduce (1x1 conv == matmul); 1/HW is folded into w1 by the wrapper.
    r = jnp.dot(s, w1_ref[...], preferred_element_type=jnp.float32) + b1_ref[...]
    r = r * jax.nn.sigmoid(r)                                           # SiLU
    # conv_expand
    e = jnp.dot(r, w2_ref[...], preferred_element_type=jnp.float32) + b2_ref[...]
    scale = jax.nn.sigmoid(e).astype(o_ref.dtype)                       # (TN, C)

    # Excite: re-read x from VMEM (free), one native-dtype multiply + one store.
    if channels_last:
        o_ref[...] = (x_ref[...] * scale[:, None, :]).astype(o_ref.dtype)
    else:
        o_ref[...] = (x_ref[...] * scale[:, :, None]).astype(o_ref.dtype)


# ----------------------------------------------------------------------------
# Sizing helpers
# ----------------------------------------------------------------------------
def _round_up(x, m):
    return -(-x // m) * m


def _padded_tile_bytes(rows, cols, itemsize):
    """Bytes of a (rows, cols) VMEM tile after lane/sublane padding."""
    sub = max(8, 32 // itemsize)          # 8 for f32, 16 for bf16, 32 for int8
    return _round_up(rows, sub) * _round_up(cols, 128) * itemsize


def _vmem_capacity_bytes():
    try:
        return int(pltpu.get_tpu_info().vmem_capacity_bytes)
    except Exception:
        return 64 << 20                   # conservative: v7x per-TensorCore


def _pick_tn(n, per_batch_bytes, vmem_budget_bytes):
    """Batch rows per grid step.

    Budget model: 2x double-buffered input tile + 2x output tile = 4 tiles
    resident.  Cap each tile at ~8 MiB (mem-bound throughput plateaus long
    before that) and, when there is slack, prefer >= 4 grid steps with an even
    count (v7x megacore balance; lets the tiny gate compute hide under the
    next step's DMA) as long as per-step DMAs stay >= ~1 MiB.
    """
    tile_cap = min(8 << 20, max(per_batch_bytes, vmem_budget_bytes // 4))
    tn = int(max(1, min(n, tile_cap // per_batch_bytes)))

    def steps(t):
        return -(-n // t)

    min_tile_bytes = 1 << 20
    while (tn > 1
           and (steps(tn) < 4 or steps(tn) % 2 != 0)
           and (tn - 1) * per_batch_bytes >= min_tile_bytes):
        tn -= 1
    return tn


# ----------------------------------------------------------------------------
# Wrapper
# ----------------------------------------------------------------------------
def squeeze_excite(x, w_reduce, b_reduce, w_expand, b_expand, *, max_tn=None):
    """x: (N, C, H, W); weights follow PyTorch Conv2d 1x1 conventions
    (w_reduce: (S, C, 1, 1), w_expand: (C, S, 1, 1))."""
    N, C, H, W = x.shape
    S = w_reduce.shape[0]
    HW = H * W
    itemsize = jnp.dtype(x.dtype).itemsize

    # ---- layout choice: put the better-aligned axis on the 128-lane axis ----
    pad_chw = _padded_tile_bytes(C, HW, itemsize)     # lane = HW
    pad_hwc = _padded_tile_bytes(HW, C, itemsize)     # lane = C (channels-last)
    channels_last = pad_hwc < pad_chw
    per_batch = pad_hwc if channels_last else pad_chw

    if channels_last:
        # Layout plumbing for lane-dense stores on small-HW stages.
        x_in = jnp.transpose(x.reshape(N, C, HW), (0, 2, 1))   # (N, HW, C)
        inner = (HW, C)
    else:
        x_in = x.reshape(N, C, HW)                             # (N, C, HW)
        inner = (C, HW)

    # ---- weight prep (free layout plumbing, no in-kernel transpose) ----
    inv_hw = 1.0 / float(HW)
    w1 = (w_reduce.reshape(S, C).T * inv_hw).astype(jnp.float32)   # (C, S), 1/HW folded in
    b1 = b_reduce.reshape(1, S).astype(jnp.float32)
    w2 = w_expand.reshape(C, S).T.astype(jnp.float32)              # (S, C)
    b2 = b_expand.reshape(1, C).astype(jnp.float32)

    # ---- tiling / VMEM bookkeeping (padded sizes) ----
    vmem_cap = _vmem_capacity_bytes()
    vmem_budget = min(vmem_cap // 2, 32 << 20)
    tn = _pick_tn(N, per_batch, vmem_budget)
    if max_tn is not None:
        tn = max(1, min(tn, int(max_tn)))
    grid = (pl.cdiv(N, tn),)

    tile_bytes = tn * per_batch
    weights_bytes = (_padded_tile_bytes(C, S, 4) + _padded_tile_bytes(1, S, 4)
                     + _padded_tile_bytes(S, C, 4) + _padded_tile_bytes(1, C, 4))
    needed = 4 * tile_bytes + 2 * weights_bytes + (4 << 20)   # + internal-scratch margin
    vmem_limit = int(max(needed, 32 << 20))
    vmem_limit = min(vmem_limit, max(vmem_cap - (4 << 20), needed))

    # ---- advisory cost: this custom call is pure HBM bandwidth ----
    cost = pl.CostEstimate(
        flops=2 * N * C * HW + 4 * N * C * S,
        transcendentals=N * (S + C),
        bytes_accessed=2 * N * C * HW * itemsize + (2 * C * S + S + C) * 4,
    )

    kernel = functools.partial(_se_kernel, channels_last=channels_last)

    out_flat = pl.pallas_call(
        kernel,
        out_shape=jax.ShapeDtypeStruct((N,) + inner, x.dtype),
        grid_spec=pltpu.PrefetchScalarGridSpec(
            num_scalar_prefetch=0,
            grid=grid,
            in_specs=[
                pl.BlockSpec((tn,) + inner, lambda n: (n, 0, 0)),   # x tile
                pl.BlockSpec((C, S), lambda n: (0, 0)),             # reduce weight^T / HW
                pl.BlockSpec((1, S), lambda n: (0, 0)),             # reduce bias
                pl.BlockSpec((S, C), lambda n: (0, 0)),             # expand weight^T
                pl.BlockSpec((1, C), lambda n: (0, 0)),             # expand bias
            ],
            out_specs=pl.BlockSpec((tn,) + inner, lambda n: (n, 0, 0)),
        ),
        compiler_params=pltpu.CompilerParams(
            dimension_semantics=("parallel",),
            vmem_limit_bytes=int(vmem_limit),
        ),
        cost_estimate=cost,
    )(x_in, w1, b1, w2, b2)

    if channels_last:
        return jnp.transpose(out_flat, (0, 2, 1)).reshape(N, C, H, W)
    return out_flat.reshape(N, C, H, W)


# ----------------------------------------------------------------------------
# Pure-JAX reference (mirrors the PyTorch forward)
# ----------------------------------------------------------------------------
def _reference(x, w_reduce, b_reduce, w_expand, b_expand):
    s = jnp.mean(x, axis=(2, 3))                                      # (N, C)
    r = s @ w_reduce.reshape(w_reduce.shape[0], -1).T + b_reduce      # (N, S)
    r = r * jax.nn.sigmoid(r)                                         # SiLU
    e = r @ w_expand.reshape(w_expand.shape[0], -1).T + b_expand      # (N, C)
    g = jax.nn.sigmoid(e)[:, :, None, None]
    return g * x


def _make_case(key, n, c, s, h, w):
    k_x, k_w1, k_b1, k_w2, k_b2 = jax.random.split(key, 5)
    x = jax.random.normal(k_x, (n, c, h, w), dtype=jnp.float32)
    w_reduce = jax.random.normal(k_w1, (s, c, 1, 1), dtype=jnp.float32) * 0.1
    b_reduce = jax.random.normal(k_b1, (s,), dtype=jnp.float32) * 0.1
    w_expand = jax.random.normal(k_w2, (c, s, 1, 1), dtype=jnp.float32) * 0.1
    b_expand = jax.random.normal(k_b2, (c,), dtype=jnp.float32) * 0.1
    return x, w_reduce, b_reduce, w_expand, b_expand


if __name__ == "__main__":
    key = jax.random.PRNGKey(0)
    k1, k2, k3 = jax.random.split(key, 3)

    # Case 1: module config (input_c=16 -> squeeze_c=4, expand_c=32), 16x16.
    # Spatial-last layout (HW=256 is a multiple of 128).
    a1 = _make_case(k1, n=2, c=32, s=4, h=16, w=16)
    o1 = jax.block_until_ready(squeeze_excite(*a1))
    assert o1.shape == a1[0].shape
    assert jnp.allclose(o1, _reference(*a1), atol=1e-5, rtol=1e-5), "case1 mismatch"

    # Case 2: late-stage-like shape (7x7 spatial, lane-friendly channel width)
    # exercises the channels-last (TN, HW, C) layout.
    a2 = _make_case(k2, n=2, c=128, s=32, h=7, w=7)
    o2 = jax.block_until_ready(squeeze_excite(*a2))
    assert o2.shape == a2[0].shape
    assert jnp.allclose(o2, _reference(*a2), atol=1e-5, rtol=1e-5), "case2 mismatch"

    # Case 3: non-divisible batch (N=3, tn=2) exercises the ragged last block.
    a3 = _make_case(k3, n=3, c=32, s=4, h=8, w=8)
    o3 = jax.block_until_ready(squeeze_excite(*a3, max_tn=2))
    assert o3.shape == a3[0].shape
    assert jnp.allclose(o3, _reference(*a3), atol=1e-5, rtol=1e-5), "case3 mismatch"

    print("KERNEL_OK")
</pallas_src>

<mosaic_0001>
module attributes {stable_mosaic.version = 11 : i64} {
  func.func @_se_kernel(%arg0: i32, %arg1: memref<2x32x256xf32, #tpu.memory_space<vmem>>, %arg2: memref<32x4xf32, #tpu.memory_space<vmem>>, %arg3: memref<1x4xf32, #tpu.memory_space<vmem>>, %arg4: memref<4x32xf32, #tpu.memory_space<vmem>>, %arg5: memref<1x32xf32, #tpu.memory_space<vmem>>, %arg6: memref<2x32x256xf32, #tpu.memory_space<vmem>>) attributes {dimension_semantics = [#tpu.dimension_semantics<parallel>], iteration_bounds = array<i64: 1>, scalar_prefetch = 0 : i64, scratch_operands = 0 : i64, tpu.core_type = #tpu.core_type<tc>, window_params = [{transform_indices = @transform_0, window_bounds = array<i64: 2, 32, 256>}, {pipeline_mode = #tpu.pipeline_mode<synchronous>, transform_indices = @transform_1, window_bounds = array<i64: 32, 4>}, {pipeline_mode = #tpu.pipeline_mode<synchronous>, transform_indices = @transform_2, window_bounds = array<i64: 1, 4>}, {pipeline_mode = #tpu.pipeline_mode<synchronous>, transform_indices = @transform_3, window_bounds = array<i64: 4, 32>}, {pipeline_mode = #tpu.pipeline_mode<synchronous>, transform_indices = @transform_4, window_bounds = array<i64: 1, 32>}, {transform_indices = @transform_5, window_bounds = array<i64: 2, 32, 256>}]} {
    %c0 = arith.constant 0 : index
    %c0_0 = arith.constant 0 : index
    %c0_1 = arith.constant 0 : index
    %0 = vector.load %arg1[%c0, %c0_0, %c0_1] : memref<2x32x256xf32, #tpu.memory_space<vmem>>, vector<2x32x256xf32>
    %cst = arith.constant dense<0.000000e+00> : vector<2x32xf32>
    %1 = vector.multi_reduction <add>, %0, %cst [2] : vector<2x32x256xf32> to vector<2x32xf32>
    %c0_2 = arith.constant 0 : index
    %c0_3 = arith.constant 0 : index
    %2 = vector.load %arg2[%c0_2, %c0_3] : memref<32x4xf32, #tpu.memory_space<vmem>>, vector<32x4xf32>
    %cst_4 = arith.constant dense<0.000000e+00> : vector<2x4xf32>
    %3 = tpu.matmul %1, %2, %cst_4 {dimension_numbers = #tpu.dot_dimension_numbers<[1], [0], [0], [1], [0, 0, 1, 1], [], []>} : vector<2x32xf32>, vector<32x4xf32>, vector<2x4xf32> -> vector<2x4xf32>
    %c0_5 = arith.constant 0 : index
    %c0_6 = arith.constant 0 : index
    %4 = vector.load %arg3[%c0_5, %c0_6] : memref<1x4xf32, #tpu.memory_space<vmem>>, vector<1x4xf32>
    %5 = vector.broadcast %4 : vector<1x4xf32> to vector<2x4xf32>
    %6 = arith.addf %3, %5 : vector<2x4xf32>
    %7 = arith.negf %6 : vector<2x4xf32>
    %8 = math.exp %7 : vector<2x4xf32>
    %cst_7 = arith.constant 1.000000e+00 : f32
    %9 = vector.broadcast %cst_7 : f32 to vector<2x4xf32>
    %10 = arith.addf %9, %8 : vector<2x4xf32>
    %11 = arith.divf %9, %10 : vector<2x4xf32>
    %12 = arith.mulf %6, %11 : vector<2x4xf32>
    %c0_8 = arith.constant 0 : index
    %c0_9 = arith.constant 0 : index
    %13 = vector.load %arg4[%c0_8, %c0_9] : memref<4x32xf32, #tpu.memory_space<vmem>>, vector<4x32xf32>
    %cst_10 = arith.constant dense<0.000000e+00> : vector<2x32xf32>
    %14 = tpu.matmul %12, %13, %cst_10 {dimension_numbers = #tpu.dot_dimension_numbers<[1], [0], [0], [1], [0, 0, 1, 1], [], []>} : vector<2x4xf32>, vector<4x32xf32>, vector<2x32xf32> -> vector<2x32xf32>
    %c0_11 = arith.constant 0 : index
    %c0_12 = arith.constant 0 : index
    %15 = vector.load %arg5[%c0_11, %c0_12] : memref<1x32xf32, #tpu.memory_space<vmem>>, vector<1x32xf32>
    %16 = vector.broadcast %15 : vector<1x32xf32> to vector<2x32xf32>
    %17 = arith.addf %14, %16 : vector<2x32xf32>
    %18 = arith.negf %17 : vector<2x32xf32>
    %19 = math.exp %18 : vector<2x32xf32>
    %cst_13 = arith.constant 1.000000e+00 : f32
    %20 = vector.broadcast %cst_13 : f32 to vector<2x32xf32>
    %21 = arith.addf %20, %19 : vector<2x32xf32>
    %22 = arith.divf %20, %21 : vector<2x32xf32>
    %c0_14 = arith.constant 0 : index
    %c0_15 = arith.constant 0 : index
    %c0_16 = arith.constant 0 : index
    %23 = vector.load %arg1[%c0_14, %c0_15, %c0_16] : memref<2x32x256xf32, #tpu.memory_space<vmem>>, vector<2x32x256xf32>
    %24 = vector.shape_cast %22 : vector<2x32xf32> to vector<2x32x1xf32>
    %25 = vector.broadcast %24 : vector<2x32x1xf32> to vector<2x32x256xf32>
    %26 = arith.mulf %23, %25 : vector<2x32x256xf32>
    %c0_17 = arith.constant 0 : index
    %c0_18 = arith.constant 0 : index
    %c0_19 = arith.constant 0 : index
    %27 = vector.load %arg6[%c0_17, %c0_18, %c0_19] : memref<2x32x256xf32, #tpu.memory_space<vmem>>, vector<2x32x256xf32>
    tpu.vector_store %arg6[%c0_17, %c0_18, %c0_19], %26 {strides = array<i32>} : memref<2x32x256xf32, #tpu.memory_space<vmem>>, vector<2x32x256xf32>,
    return
  }
  func.func @transform_0(%arg0: i32) -> (i32, i32, i32) {
    %c0_i32 = arith.constant 0 : i32
    %c0_i32_0 = arith.constant 0 : i32
    %c0_i32_1 = arith.constant 0 : i32
    return %arg0, %c0_i32, %c0_i32_0 : i32, i32, i32
  }
  func.func @transform_1(%arg0: i32) -> (i32, i32) {
    %c0_i32 = arith.constant 0 : i32
    %c0_i32_0 = arith.constant 0 : i32
    %c0_i32_1 = arith.constant 0 : i32
    return %c0_i32, %c0_i32_0 : i32, i32
  }
  func.func @transform_2(%arg0: i32) -> (i32, i32) {
    %c0_i32 = arith.constant 0 : i32
    %c0_i32_0 = arith.constant 0 : i32
    %c0_i32_1 = arith.constant 0 : i32
    return %c0_i32, %c0_i32_0 : i32, i32
  }
  func.func @transform_3(%arg0: i32) -> (i32, i32) {
    %c0_i32 = arith.constant 0 : i32
    %c0_i32_0 = arith.constant 0 : i32
    %c0_i32_1 = arith.constant 0 : i32
    return %c0_i32, %c0_i32_0 : i32, i32
  }
  func.func @transform_4(%arg0: i32) -> (i32, i32) {
    %c0_i32 = arith.constant 0 : i32
    %c0_i32_0 = arith.constant 0 : i32
    %c0_i32_1 = arith.constant 0 : i32
    return %c0_i32, %c0_i32_0 : i32, i32
  }
  func.func @transform_5(%arg0: i32) -> (i32, i32, i32) {
    %c0_i32 = arith.constant 0 : i32
    %c0_i32_0 = arith.constant 0 : i32
    %c0_i32_1 = arith.constant 0 : i32
    return %arg0, %c0_i32, %c0_i32_0 : i32, i32, i32
  }
}

</mosaic_0001>

<llo_original>
// kernel: tpu_custom_call.1
$region0: #{tpu_custom_call.1}
  #allocation0 [shape = 'u32[]', space=smem, size = 0x4, offset = 0x4, fixed_abs, tag = 'smem constant byte address 0x4 - core index']
  #allocation1 [shape = 'u32[144,128]{1,0:T(1,128)}', space=vmem, size = 0x12000, scoped, tag = 'internal scratch']
  %s0 = inlined_call_operand.hbm [shape: f32[2,32,256], index: 0, kind: input, shape index: {}]
  %s1 = inlined_call_operand.vmem [shape: f32[32,4], index: 1, kind: input, shape index: {}]
  %s2 = inlined_call_operand.vmem [shape: f32[1,4], index: 2, kind: input, shape index: {}]
  %s3 = inlined_call_operand.vmem [shape: f32[4,32], index: 3, kind: input, shape index: {}]
  %s4 = inlined_call_operand.vmem [shape: f32[1,32], index: 4, kind: input, shape index: {}]
  %s5 = inlined_call_operand.hbm [shape: f32[2,32,256], index: 5, kind: output, shape index: {}]
  %s6 = sld [smem:[#allocation0]]
  $region34: #{tpu_custom_call.1} parent=0
    _
  %s8 = ssub.s32 1, %s6
  %s9 = scalar_select 0, %s8, %s6
  $region1: #{tpu_custom_call.1} parent=0
    #allocation2 [shape = 'u8[65536]{0}', space=vmem, size = 0x10000, scoped, tag = 'input window, operand 0, single buffered']
    #allocation3 [shape = 's32[1]{0}', space=sflag, size = 0x4, scoped, tag = 'scoped memory for tpu_custom_call.1']
    #allocation4 [shape = 's32[1]{0}', space=sflag, size = 0x4, scoped, tag = 'scoped memory for tpu_custom_call.1']
    #allocation5 [shape = 'u8[65536]{0}', space=vmem, size = 0x10000, scoped, tag = 'output window, operand 0, single buffered']
    %10 = vsyncpa [#allocation3], 0
    %11 = vsyncpa [#allocation4], 0
    // Predicated region
    $region2: #{tpu_custom_call.1} parent=1 // pred_check
      _
    $region3: #{tpu_custom_call.1} parent=1 // pred_check_branch
      %13 = sbr.rel (0) target = $region5
    $region4: #{tpu_custom_call.1} parent=1 // pred_region
      %s15 = ssub.s32 2048, 2048
      %16 = vsyncadd [#allocation3], %s15
      %s17 = sshll.u32 [#allocation2], 4
      %s18 = int_to_ptr.vmem [resolvable:$true] %s17
      %23 = dma.hbm_to_vmem [thread:$0]  %s0, 2048, %s18, [#allocation3], 256, 256, 16
    $region5: #{tpu_custom_call.1} parent=1 // pred_fallthru
      _
    // Predicated region
    $region6: #{tpu_custom_call.1} parent=1 // pred_check
      _
    $region7: #{tpu_custom_call.1} parent=1 // pred_check_branch
      %25 = sbr.rel (0) target = $region9
    $region8: #{tpu_custom_call.1} parent=1 // pred_region
      _
    $region9: #{tpu_custom_call.1} parent=1 // pred_fallthru
      _
    // Predicated region
    $region10: #{tpu_custom_call.1} parent=1 // pred_check
      _
    $region11: #{tpu_custom_call.1} parent=1 // pred_check_branch
      %27 = sbr.rel (0) target = $region13
    $region12: #{tpu_custom_call.1} parent=1 // pred_region
      _
    $region13: #{tpu_custom_call.1} parent=1 // pred_fallthru
      _
    // Predicated region
    $region14: #{tpu_custom_call.1} parent=1 // pred_check
      _
    $region15: #{tpu_custom_call.1} parent=1 // pred_check_branch
      %29 = sbr.rel (0) target = $region17
    $region16: #{tpu_custom_call.1} parent=1 // pred_region
      _
    $region17: #{tpu_custom_call.1} parent=1 // pred_fallthru
      _
    // Predicated region
    $region18: #{tpu_custom_call.1} parent=1 // pred_check
      _
    $region19: #{tpu_custom_call.1} parent=1 // pred_check_branch
      %31 = sbr.rel (0) target = $region21
    $region20: #{tpu_custom_call.1} parent=1 // pred_region
      _
    $region21: #{tpu_custom_call.1} parent=1 // pred_fallthru
      _
    // Predicated region
    $region22: #{tpu_custom_call.1} parent=1 // pred_check
      _
    $region23: #{tpu_custom_call.1} parent=1 // pred_check_branch
      %33 = sbr.rel (0) target = $region25
    $region24: #{tpu_custom_call.1} parent=1 // pred_region
      %34 = dma.done [#allocation3], 2048
    $region25: #{tpu_custom_call.1} parent=1 // pred_fallthru
      _
    %v35 = vld [vmem:[#allocation2] sm:$0xff]
    %v36 = vld [vmem:[#allocation2 + $0x8] sm:$0xff]
    %v37 = vld [vmem:[#allocation2 + $0x10] sm:$0xff]
    %v38 = vld [vmem:[#allocation2 + $0x18] sm:$0xff]
    %v39 = vld [vmem:[#allocation2 + $0x20] sm:$0xff]
    %v40 = vld [vmem:[#allocation2 + $0x28] sm:$0xff]
    %v41 = vld [vmem:[#allocation2 + $0x30] sm:$0xff]
    %v42 = vld [vmem:[#allocation2 + $0x38] sm:$0xff]
    %v43 = vld [vmem:[#allocation2 + $0x40] sm:$0xff]
    %v44 = vld [vmem:[#allocation2 + $0x48] sm:$0xff]
    %v45 = vld [vmem:[#allocation2 + $0x50] sm:$0xff]
    %v46 = vld [vmem:[#allocation2 + $0x58] sm:$0xff]
    %v47 = vld [vmem:[#allocation2 + $0x60] sm:$0xff]
    %v48 = vld [vmem:[#allocation2 + $0x68] sm:$0xff]
    %v49 = vld [vmem:[#allocation2 + $0x70] sm:$0xff]
    %v50 = vld [vmem:[#allocation2 + $0x78] sm:$0xff]
    %v51 = vadd.f32 %v35, %v36
    %52 = vadd.xlane.f32.xlu0 %v51
    %v53 = vpop.xlane.xlu0 %52
    %v54 = vadd.f32 %v37, %v38
    %55 = vadd.xlane.f32.xlu0 %v54
    %v56 = vpop.xlane.xlu0 %55
    %v57 = vadd.f32 %v39, %v40
    %58 = vadd.xlane.f32.xlu0 %v57
    %v59 = vpop.xlane.xlu0 %58
    %v60 = vadd.f32 %v41, %v42
    %61 = vadd.xlane.f32.xlu0 %v60
    %v62 = vpop.xlane.xlu0 %61
    %v63 = vadd.f32 %v43, %v44
    %64 = vadd.xlane.f32.xlu0 %v63
    %v65 = vpop.xlane.xlu0 %64
    %v66 = vadd.f32 %v45, %v46
    %67 = vadd.xlane.f32.xlu0 %v66
    %v68 = vpop.xlane.xlu0 %67
    %v69 = vadd.f32 %v47, %v48
    %70 = vadd.xlane.f32.xlu0 %v69
    %v71 = vpop.xlane.xlu0 %70
    %v72 = vadd.f32 %v49, %v50
    %73 = vadd.xlane.f32.xlu0 %v72
    %v74 = vpop.xlane.xlu0 %73
    %v75 = vld [vmem:[%s1] sm:$0xff]
    %v76 = vld [vmem:[%s1 + $0x8] sm:$0xff]
    %v77 = vld [vmem:[%s1 + $0x10] sm:$0xff]
    %v78 = vld [vmem:[%s1 + $0x18] sm:$0xff]
    %v79 = vld [vmem:[%s2] sm:$0x1]
    %v81 = vlaneseq
    %v82 = vshrl.u32 %v81, 7
    %v83 = vsub.s32 0, %v82
    %v84 = vrot.slane %v79, %v83
    %v94 = vlaneseq
    %v95 = vand.u32 %v94, 127
    %v96 = vlaneseq
    %v97 = vshrl.u32 %v96, 7
    %v98 = vsub.s32 %v95, %v97
    %v99 = vrot.slane %v53, %v98
    %v100 = vadd.s32 %v95, 4294967288
    %v101 = vlaneseq
    %v102 = vshrl.u32 %v101, 7
    %v103 = vsub.s32 %v100, %v102
    %v104 = vrot.slane %v56, %v103
    %vm105 = vcmask 130112
    %v106 = vsel %vm105, %v104, %v99
    %v107 = vadd.s32 %v95, 4294967280
    %v108 = vlaneseq
    %v109 = vshrl.u32 %v108, 7
    %v110 = vsub.s32 %v107, %v109
    %v111 = vrot.slane %v59, %v110
    %vm112 = vcmask 195712
    %v113 = vsel %vm112, %v111, %v106
    %v114 = vadd.s32 %v95, 4294967272
    %v115 = vlaneseq
    %v116 = vshrl.u32 %v115, 7
    %v117 = vsub.s32 %v114, %v116
    %v118 = vrot.slane %v62, %v117
    %vm119 = vcmask 261312
    %v120 = vsel %vm119, %v118, %v113
    %v121 = vlaneseq
    %v122 = vshrl.u32 %v121, 7
    %v123 = vsub.s32 %v95, %v122
    %v124 = vrot.slane %v65, %v123
    %v125 = vlaneseq
    %v126 = vshrl.u32 %v125, 7
    %v127 = vsub.s32 %v100, %v126
    %v128 = vrot.slane %v68, %v127
    %v129 = vsel %vm105, %v128, %v124
    %v130 = vlaneseq
    %v131 = vshrl.u32 %v130, 7
    %v132 = vsub.s32 %v107, %v131
    %v133 = vrot.slane %v71, %v132
    %v134 = vsel %vm112, %v133, %v129
    %v135 = vlaneseq
    %v136 = vshrl.u32 %v135, 7
    %v137 = vsub.s32 %v114, %v136
    %v138 = vrot.slane %v74, %v137
    %v139 = vsel %vm119, %v138, %v134
    %vm140 = vcmask 1041409
    %v141 = vsel %vm140, %v139, %v120
    %vm142 = vcmask 261120
    %v143 = vsel %vm142, %v141, 0
    %145 = vmatprep.subr.mxu0 0.0
    %146 = vmatpush1.msra.mxu0 %v75
    %147 = vmatprep.subr.mxu0 0.0
    %148 = vmatpush1.msra.mxu0 %v76
    %149 = vmatprep.subr.mxu0 0.0
    %150 = vmatpush1.msra.mxu0 %v77
    %151 = vmatprep.subr.mxu0 0.0
    %152 = vmatpush1.msra.mxu0 %v78
    %153 = vmatprep.subr.mxu0 0.0
    %154 = vmatpush1.msra.mxu0 0.0
    %155 = vmatprep.subr.mxu0 0.0
    %156 = vmatpush1.msra.mxu0 0.0
    %157 = vmatprep.subr.mxu0 0.0
    %158 = vmatpush1.msra.mxu0 0.0
    %159 = vmatprep.subr.mxu0 0.0
    %160 = vmatpush1.msra.mxu0 0.0
    %161 = vmatprep.subr.mxu0 0.0
    %162 = vmatpush1.msra.mxu0 0.0
    %163 = vmatprep.subr.mxu0 0.0
    %164 = vmatpush1.msra.mxu0 0.0
    %165 = vmatprep.subr.mxu0 0.0
    %166 = vmatpush1.msra.mxu0 0.0
    %167 = vmatprep.subr.mxu0 0.0
    %168 = vmatpush1.msra.mxu0 0.0
    %169 = vmatprep.subr.mxu0 0.0
    %170 = vmatpush1.msra.mxu0 0.0
    %171 = vmatprep.subr.mxu0 0.0
    %172 = vmatpush1.msra.mxu0 0.0
    %173 = vmatprep.subr.mxu0 0.0
    %174 = vmatpush1.msra.mxu0 0.0
    %175 = vmatprep.subr.mxu0 0.0
    %176 = vmatpush1.msra.mxu0 0.0
    %177 = vmatprep.subr.mxu0 0.0
    %178 = vmatpush1.msra.mxu0 0.0
    %179 = vmatprep.subr.mxu0 0.0
    %180 = vmatpush1.msra.mxu0 0.0
    %181 = vmatprep.subr.mxu0 0.0
    %182 = vmatpush1.msra.mxu0 0.0
    %183 = vmatprep.subr.mxu0 0.0
    %184 = vmatpush1.msra.mxu0 0.0
    %185 = vmatprep.subr.mxu0 0.0
    %186 = vmatpush1.msra.mxu0 0.0
    %187 = vmatprep.subr.mxu0 0.0
    %188 = vmatpush1.msra.mxu0 0.0
    %189 = vmatprep.subr.mxu0 0.0
    %190 = vmatpush1.msra.mxu0 0.0
    %191 = vmatprep.subr.mxu0 0.0
    %192 = vmatpush1.msra.mxu0 0.0
    %193 = vmatprep.subr.mxu0 0.0
    %194 = vmatpush1.msra.mxu0 0.0
    %195 = vmatprep.subr.mxu0 0.0
    %196 = vmatpush1.msra.mxu0 0.0
    %197 = vmatprep.subr.mxu0 0.0
    %198 = vmatpush1.msra.mxu0 0.0
    %199 = vmatprep.subr.mxu0 0.0
    %200 = vmatpush1.msra.mxu0 0.0
    %201 = vmatprep.subr.mxu0 0.0
    %202 = vmatpush1.msra.mxu0 0.0
    %203 = vmatprep.subr.mxu0 0.0
    %204 = vmatpush1.msra.mxu0 0.0
    %205 = vmatprep.subr.mxu0 0.0
    %206 = vmatpush1.msra.mxu0 0.0
    %207 = vmatprep.subr.mxu0 0.0
    %208 = vmatpush1.msra.mxu0 0.0
    %209 = vmatprep.mubr.f32.mxu0 0.0
    %210 = vmatmul.mubr.f32.gmra.mrb[0].mxu0 %v143
    %v211 = vpop.f32.mrb[0].mxu0
    %v212 = vadd.f32 %v84, %v211
    %v213 = vpop.f32.mrb[0].mxu0
    %214 = vdwg.mxu0
    %v215 = vxor.u32 %v212, 2147483648
    %v216 = vmul.f32 %v215, 1.442695
    %v217 = vpow.pop %v216
    %v218 = vadd.f32 %v217, 1.0
    %v219 = vrcp.pop %v218
    %v220 = vmul.f32 1.0, %v219
    %v221 = vmul.f32 %v212, %v220
    %v222 = vld [vmem:[%s3] sm:$0xf]
    %v223 = vld [vmem:[%s4] sm:$0x1]
    %v225 = vlaneseq
    %v226 = vshrl.u32 %v225, 7
    %v227 = vsub.s32 0, %v226
    %v228 = vrot.slane %v223, %v227
    %vm230 = vcmask 31744
    %v232 = vsel %vm230, %v221, 0
    %vm234 = vcmask 1043456
    %v236 = vsel %vm234, %v222, 0
    %238 = vmatprep.subr.mxu0 0.0
    %239 = vmatpush1.msra.mxu0 %v236
    %240 = vmatprep.subr.mxu0 0.0
    %241 = vmatpush1.msra.mxu0 0.0
    %242 = vmatprep.subr.mxu0 0.0
    %243 = vmatpush1.msra.mxu0 0.0
    %244 = vmatprep.subr.mxu0 0.0
    %245 = vmatpush1.msra.mxu0 0.0
    %246 = vmatprep.subr.mxu0 0.0
    %247 = vmatpush1.msra.mxu0 0.0
    %248 = vmatprep.subr.mxu0 0.0
    %249 = vmatpush1.msra.mxu0 0.0
    %250 = vmatprep.subr.mxu0 0.0
    %251 = vmatpush1.msra.mxu0 0.0
    %252 = vmatprep.subr.mxu0 0.0
    %253 = vmatpush1.msra.mxu0 0.0
    %254 = vmatprep.subr.mxu0 0.0
    %255 = vmatpush1.msra.mxu0 0.0
    %256 = vmatprep.subr.mxu0 0.0
    %257 = vmatpush1.msra.mxu0 0.0
    %258 = vmatprep.subr.mxu0 0.0
    %259 = vmatpush1.msra.mxu0 0.0
    %260 = vmatprep.subr.mxu0 0.0
    %261 = vmatpush1.msra.mxu0 0.0
    %262 = vmatprep.subr.mxu0 0.0
    %263 = vmatpush1.msra.mxu0 0.0
    %264 = vmatprep.subr.mxu0 0.0
    %265 = vmatpush1.msra.mxu0 0.0
    %266 = vmatprep.subr.mxu0 0.0
    %267 = vmatpush1.msra.mxu0 0.0
    %268 = vmatprep.subr.mxu0 0.0
    %269 = vmatpush1.msra.mxu0 0.0
    %270 = vmatprep.subr.mxu0 0.0
    %271 = vmatpush1.msra.mxu0 0.0
    %272 = vmatprep.subr.mxu0 0.0
    %273 = vmatpush1.msra.mxu0 0.0
    %274 = vmatprep.subr.mxu0 0.0
    %275 = vmatpush1.msra.mxu0 0.0
    %276 = vmatprep.subr.mxu0 0.0
    %277 = vmatpush1.msra.mxu0 0.0
    %278 = vmatprep.subr.mxu0 0.0
    %279 = vmatpush1.msra.mxu0 0.0
    %280 = vmatprep.subr.mxu0 0.0
    %281 = vmatpush1.msra.mxu0 0.0
    %282 = vmatprep.subr.mxu0 0.0
    %283 = vmatpush1.msra.mxu0 0.0
    %284 = vmatprep.subr.mxu0 0.0
    %285 = vmatpush1.msra.mxu0 0.0
    %286 = vmatprep.subr.mxu0 0.0
    %287 = vmatpush1.msra.mxu0 0.0
    %288 = vmatprep.subr.mxu0 0.0
    %289 = vmatpush1.msra.mxu0 0.0
    %290 = vmatprep.subr.mxu0 0.0
    %291 = vmatpush1.msra.mxu0 0.0
    %292 = vmatprep.subr.mxu0 0.0
    %293 = vmatpush1.msra.mxu0 0.0
    %294 = vmatprep.subr.mxu0 0.0
    %295 = vmatpush1.msra.mxu0 0.0
    %296 = vmatprep.subr.mxu0 0.0
    %297 = vmatpush1.msra.mxu0 0.0
    %298 = vmatprep.subr.mxu0 0.0
    %299 = vmatpush1.msra.mxu0 0.0
    %300 = vmatprep.subr.mxu0 0.0
    %301 = vmatpush1.msra.mxu0 0.0
    %302 = vmatprep.mubr.f32.mxu0 0.0
    %303 = vmatmul.mubr.f32.gmra.mrb[0].mxu0 %v232
    %v304 = vpop.f32.mrb[0].mxu0
    %v305 = vadd.f32 %v228, %v304
    %v306 = vpop.f32.mrb[0].mxu0
    %307 = vdwg.mxu0
    %v308 = vxor.u32 %v305, 2147483648
    %v309 = vmul.f32 %v308, 1.442695
    %v310 = vpow.pop %v309
    %v311 = vadd.f32 %v310, 1.0
    %v312 = vrcp.pop %v311
    %v313 = vmul.f32 1.0, %v312
    %v314 = vlaneseq
    %v315 = vshrl.u32 %v314, 7
    %v316 = vsub.s32 0, %v315
    %v317 = vrot.slane %v313, %v316
    %319 = vbcast.lane.b32.xlu0 %v317, 256
    %v320 = vpop.permute.xlu0 %319
    %s322 = sor.u32 256, 8
    %323 = vbcast.lane.b32.xlu0 %v317, %s322
    %v324 = vpop.permute.xlu0 %323
    %s326 = sor.u32 256, 16
    %327 = vbcast.lane.b32.xlu0 %v317, %s326
    %v328 = vpop.permute.xlu0 %327
    %s330 = sor.u32 256, 24
    %331 = vbcast.lane.b32.xlu0 %v317, %s330
    %v332 = vpop.permute.xlu0 %331
    %v333 = vlaneseq
    %v334 = vshrl.u32 %v333, 7
    %v335 = vsub.s32 1, %v334
    %v336 = vrot.slane %v313, %v335
    %338 = vbcast.lane.b32.xlu0 %v336, 256
    %v339 = vpop.permute.xlu0 %338
    %s341 = sor.u32 256, 8
    %342 = vbcast.lane.b32.xlu0 %v336, %s341
    %v343 = vpop.permute.xlu0 %342
    %s345 = sor.u32 256, 16
    %346 = vbcast.lane.b32.xlu0 %v336, %s345
    %v347 = vpop.permute.xlu0 %346
    %s349 = sor.u32 256, 24
    %350 = vbcast.lane.b32.xlu0 %v336, %s349
    %v351 = vpop.permute.xlu0 %350
    %v352 = vmul.f32 %v35, %v320
    %v353 = vmul.f32 %v36, %v320
    %v354 = vmul.f32 %v37, %v324
    %v355 = vmul.f32 %v38, %v324
    %v356 = vmul.f32 %v39, %v328
    %v357 = vmul.f32 %v40, %v328
    %v358 = vmul.f32 %v41, %v332
    %v359 = vmul.f32 %v42, %v332
    %v360 = vmul.f32 %v43, %v339
    %v361 = vmul.f32 %v44, %v339
    %v362 = vmul.f32 %v45, %v343
    %v363 = vmul.f32 %v46, %v343
    %v364 = vmul.f32 %v47, %v347
    %v365 = vmul.f32 %v48, %v347
    %v366 = vmul.f32 %v49, %v351
    %v367 = vmul.f32 %v50, %v351
    %368 = vst [vmem:[#allocation5] sm:$0xff] %v352
    %369 = vst [vmem:[#allocation5 + $0x8] sm:$0xff] %v353
    %370 = vst [vmem:[#allocation5 + $0x10] sm:$0xff] %v354
    %371 = vst [vmem:[#allocation5 + $0x18] sm:$0xff] %v355
    %372 = vst [vmem:[#allocation5 + $0x20] sm:$0xff] %v356
    %373 = vst [vmem:[#allocation5 + $0x28] sm:$0xff] %v357
    %374 = vst [vmem:[#allocation5 + $0x30] sm:$0xff] %v358
    %375 = vst [vmem:[#allocation5 + $0x38] sm:$0xff] %v359
    %376 = vst [vmem:[#allocation5 + $0x40] sm:$0xff] %v360
    %377 = vst [vmem:[#allocation5 + $0x48] sm:$0xff] %v361
    %378 = vst [vmem:[#allocation5 + $0x50] sm:$0xff] %v362
    %379 = vst [vmem:[#allocation5 + $0x58] sm:$0xff] %v363
    %380 = vst [vmem:[#allocation5 + $0x60] sm:$0xff] %v364
    %381 = vst [vmem:[#allocation5 + $0x68] sm:$0xff] %v365
    %382 = vst [vmem:[#allocation5 + $0x70] sm:$0xff] %v366
    %383 = vst [vmem:[#allocation5 + $0x78] sm:$0xff] %v367
    // Predicated region
    $region26: #{tpu_custom_call.1} parent=1 // pred_check
      _
    $region27: #{tpu_custom_call.1} parent=1 // pred_check_branch
      %385 = sbr.rel (0) target = $region29
    $region28: #{tpu_custom_call.1} parent=1 // pred_region
      %s387 = ssub.s32 2048, 2048
      %388 = vsyncadd [#allocation4], %s387
      %s389 = sshll.u32 [#allocation5], 4
      %s390 = int_to_ptr.vmem [resolvable:$true] %s389
      %395 = dma.vmem_to_hbm [thread:$0]  %s390, 2048, %s5, [#allocation4], 256, 256, 16
    $region29: #{tpu_custom_call.1} parent=1 // pred_fallthru
      _
    // Predicated region
    $region30: #{tpu_custom_call.1} parent=1 // pred_check
      _
    $region31: #{tpu_custom_call.1} parent=1 // pred_check_branch
      %397 = sbr.rel (0) target = $region33
    $region32: #{tpu_custom_call.1} parent=1 // pred_region
      %398 = dma.done [#allocation4], 2048
    $region33: #{tpu_custom_call.1} parent=1 // pred_fallthru
      _
    %399 = vsyncpa [#allocation3], 1
    %400 = vsyncpa [#allocation4], 1

</llo_original>
